<compile_context>
chip_gen: v6e
topology: v6e:2x2x1
jax: 0.10.0
libtpu: 0.0.40
codegen_flags: <defaults>
</compile_context>

<pallas_src>
import functools

import jax
import jax.numpy as jnp
from jax.experimental import pallas as pl
from jax.experimental.pallas import tpu as pltpu


def _round_up(x: int, m: int) -> int:
    return ((x + m - 1) // m) * m


def _cdiv(a: int, b: int) -> int:
    return (a + b - 1) // b


def _device_defaults():
    """(target f32-equivalent block bytes, scoped VMEM limit) per TPU generation."""
    vmem_cap = 64 * 1024 * 1024  # conservative fallback (v7x-sized VMEM)
    try:
        info = pltpu.get_tpu_info()
        vmem_cap = int(getattr(info, "vmem_capacity_bytes", vmem_cap))
    except Exception:
        pass
    if vmem_cap >= 128 * 1024 * 1024:
        # v5e / v6e: plenty of VMEM -> bigger tiles amortize per-step overhead.
        return 4 * 1024 * 1024, 64 * 1024 * 1024
    # v7x-class (64 MiB VMEM): smaller blocks, tighter scoped limit, leave headroom
    # for the ~6 live f32 (TB,C) temporaries + 2 inputs x 2 pipeline buffers.
    return 2 * 1024 * 1024, 40 * 1024 * 1024


def _distill_kl_kernel(ys_ref, yt_ref, out_ref, *, inv_T: float,
                       total_rows: int, mask_rows: bool):
    # (TB, C) tiles; compute in f32 regardless of input dtype (bf16 inputs are
    # upcast in-VMEM, so HBM read traffic is halved for bf16 callers).
    z_s = ys_ref[...].astype(jnp.float32) * inv_T
    z_t = yt_ref[...].astype(jnp.float32) * inv_T

    # Max-subtracted shifted logits (softmax over the class axis = axis 1).
    sh_s = z_s - jnp.max(z_s, axis=1, keepdims=True)
    sh_t = z_t - jnp.max(z_t, axis=1, keepdims=True)

    exp_s = jnp.exp(sh_s)
    exp_t = jnp.exp(sh_t)
    sum_s = jnp.sum(exp_s, axis=1, keepdims=True)   # (TB, 1)
    sum_t = jnp.sum(exp_t, axis=1, keepdims=True)   # (TB, 1)

    # sum_c p_t * (log p_t - log p_s)
    #   = (1/sum_t) * sum_c exp_t * (sh_t - sh_s) - (log sum_t - log sum_s)
    cross = jnp.sum(exp_t * (sh_t - sh_s), axis=1, keepdims=True)  # (TB, 1)
    # Exact divide on a (TB,1) row vector only (pl.reciprocal(approx=True) is an
    # option, but it perturbs the result vs. the f32 reference for ~0 gain here).
    kl = cross / sum_t - (jnp.log(sum_t) - jnp.log(sum_s))          # (TB, 1)

    if mask_rows:
        # Ragged last tile: rows >= B hold garbage (possibly inf/NaN per-row KL);
        # select 0 for them so the partial sum stays exact. jnp.where is a select,
        # so NaNs in the unselected branch never propagate.
        tb = kl.shape[0]
        row = pl.program_id(0) * tb + jax.lax.broadcasted_iota(
            jnp.int32, (tb, 1), 0)
        kl = jnp.where(row < total_rows, kl, 0.0)

    # One scalar partial sum per grid step (review item 2): 4 B writeback/step.
    out_ref[...] = jnp.sum(kl, axis=0, keepdims=True)               # (1, 1)


def distill_kl(y_s: jax.Array, y_t: jax.Array, T: float,
               *, target_block_bytes: int | None = None,
               vmem_limit_bytes: int | None = None) -> jax.Array:
    """Pallas implementation of DistillKL.forward(y_s, y_t)."""
    assert y_s.shape == y_t.shape and y_s.ndim == 2
    B, C = y_s.shape

    default_block, default_vmem = _device_defaults()
    if target_block_bytes is None:
        target_block_bytes = default_block
    if vmem_limit_bytes is None:
        vmem_limit_bytes = default_vmem

    # dtype-aware sublane rounding: 8 rows for f32, 16 for bf16, 32 for int8/fp8.
    min_item = min(jnp.dtype(y_s.dtype).itemsize, jnp.dtype(y_t.dtype).itemsize)
    sub = max(8, 32 // max(1, int(min_item)))

    # Rows per tile from an f32-equivalent VMEM budget (temporaries are f32
    # regardless of the input dtype), rounded down to the sublane multiple.
    tb = max(sub, (target_block_bytes // (C * 4)) // sub * sub)
    b_ceil = _round_up(B, sub)
    tb = min(tb, b_ceil)
    # Guarantee >= 2 grid tiles when B allows it so dimension_semantics
    # ("parallel",) can shard the row grid across both TensorCores on v7x.
    if tb == b_ceil and b_ceil >= 2 * sub:
        tb = _round_up(_cdiv(b_ceil, 2), sub)

    num_tiles = _cdiv(B, tb)
    mask_rows = (B % tb) != 0   # only the ragged case needs in-kernel masking

    kernel = functools.partial(
        _distill_kl_kernel,
        inv_T=1.0 / float(T),
        total_rows=B,
        mask_rows=mask_rows,
    )

    partials = pl.pallas_call(
        kernel,
        out_shape=jax.ShapeDtypeStruct((num_tiles, 1), jnp.float32),
        grid_spec=pltpu.PrefetchScalarGridSpec(
            num_scalar_prefetch=0,
            grid=(num_tiles,),
            in_specs=[
                pl.BlockSpec((tb, C), lambda i: (i, 0)),
                pl.BlockSpec((tb, C), lambda i: (i, 0)),
            ],
            out_specs=pl.BlockSpec((1, 1), lambda i: (i, 0)),
        ),
        compiler_params=pltpu.CompilerParams(
            dimension_semantics=("parallel",),
            vmem_limit_bytes=int(vmem_limit_bytes),
        ),
    )(y_s, y_t)

    # Tiny wrapper-side reduction over num_tiles scalars + T^2/B scaling.
    return jnp.sum(partials) * (float(T) * float(T)) / B


def _reference(y_s, y_t, T):
    # Pure-JAX reference matching the PyTorch forward.
    log_p_s = jax.nn.log_softmax(y_s / T, axis=1)
    p_t = jax.nn.softmax(y_t / T, axis=1)
    log_p_t = jax.nn.log_softmax(y_t / T, axis=1)
    return jnp.sum(p_t * (log_p_t - log_p_s)) * T ** 2 / y_s.shape[0]


if __name__ == "__main__":
    T = 4.0
    key = jax.random.PRNGKey(0)
    k1, k2, k3, k4, k5, k6 = jax.random.split(key, 6)

    # 1) Small single-tile case: batch=8, classes=32.
    y_s = jax.random.normal(k1, (8, 32), dtype=jnp.float32)
    y_t = jax.random.normal(k2, (8, 32), dtype=jnp.float32)
    loss = distill_kl(y_s, y_t, T)
    jax.block_until_ready(loss)
    ref = _reference(y_s, y_t, T)
    assert jnp.allclose(loss, ref, rtol=1e-4, atol=1e-5), (loss, ref)

    # 2) Ragged batch (52 % 8 != 0) + C not a multiple of 128 (C=100) + a
    #    forced-small tile so several grid steps run: exercises the in-kernel
    #    last-tile row mask and the per-tile (1,1) partial sums. No jnp.pad.
    y_s2 = jax.random.normal(k3, (52, 100), dtype=jnp.float32)
    y_t2 = jax.random.normal(k4, (52, 100), dtype=jnp.float32)
    loss2 = distill_kl(y_s2, y_t2, T, target_block_bytes=8 * 100 * 4)
    jax.block_until_ready(loss2)
    ref2 = _reference(y_s2, y_t2, T)
    assert jnp.allclose(loss2, ref2, rtol=1e-4, atol=1e-5), (loss2, ref2)

    # 3) bf16 logits at the call site (halves HBM read traffic); the kernel
    #    upcasts to f32 in-VMEM, and TB is rounded to the bf16 sublane pack (16).
    y_s3 = jax.random.normal(k5, (64, 128), dtype=jnp.float32).astype(jnp.bfloat16)
    y_t3 = jax.random.normal(k6, (64, 128), dtype=jnp.float32).astype(jnp.bfloat16)
    loss3 = distill_kl(y_s3, y_t3, T)
    jax.block_until_ready(loss3)
    ref3 = _reference(y_s3.astype(jnp.float32), y_t3.astype(jnp.float32), T)
    assert jnp.allclose(loss3, ref3, rtol=1e-4, atol=1e-5), (loss3, ref3)

    print("KERNEL_OK")
</pallas_src>

<mosaic_0001>
module attributes {stable_mosaic.version = 11 : i64} {
  func.func @_distill_kl_kernel(%arg0: i32, %arg1: memref<8x32xf32, #tpu.memory_space<vmem>>, %arg2: memref<8x32xf32, #tpu.memory_space<vmem>>, %arg3: memref<1x1xf32, #tpu.memory_space<vmem>>) attributes {dimension_semantics = [#tpu.dimension_semantics<parallel>], iteration_bounds = array<i64: 1>, scalar_prefetch = 0 : i64, scratch_operands = 0 : i64, tpu.core_type = #tpu.core_type<tc>, window_params = [{transform_indices = @transform_0, window_bounds = array<i64: 8, 32>}, {transform_indices = @transform_1, window_bounds = array<i64: 8, 32>}, {transform_indices = @transform_2, window_bounds = array<i64: 1, 1>}]} {
    %c0 = arith.constant 0 : index
    %c0_0 = arith.constant 0 : index
    %0 = vector.load %arg1[%c0, %c0_0] : memref<8x32xf32, #tpu.memory_space<vmem>>, vector<8x32xf32>
    %cst = arith.constant 2.500000e-01 : f32
    %1 = vector.broadcast %cst : f32 to vector<8x32xf32>
    %2 = arith.mulf %0, %1 : vector<8x32xf32>
    %c0_1 = arith.constant 0 : index
    %c0_2 = arith.constant 0 : index
    %3 = vector.load %arg2[%c0_1, %c0_2] : memref<8x32xf32, #tpu.memory_space<vmem>>, vector<8x32xf32>
    %cst_3 = arith.constant 2.500000e-01 : f32
    %4 = vector.broadcast %cst_3 : f32 to vector<8x32xf32>
    %5 = arith.mulf %3, %4 : vector<8x32xf32>
    %cst_4 = arith.constant dense<0xFF800000> : vector<8xf32>
    %6 = vector.multi_reduction <maximumf>, %2, %cst_4 [1] : vector<8x32xf32> to vector<8xf32>
    %7 = vector.shape_cast %6 : vector<8xf32> to vector<8x1xf32>
    %8 = vector.broadcast %7 : vector<8x1xf32> to vector<8x32xf32>
    %9 = arith.subf %2, %8 : vector<8x32xf32>
    %cst_5 = arith.constant dense<0xFF800000> : vector<8xf32>
    %10 = vector.multi_reduction <maximumf>, %5, %cst_5 [1] : vector<8x32xf32> to vector<8xf32>
    %11 = vector.shape_cast %10 : vector<8xf32> to vector<8x1xf32>
    %12 = vector.broadcast %11 : vector<8x1xf32> to vector<8x32xf32>
    %13 = arith.subf %5, %12 : vector<8x32xf32>
    %14 = math.exp %9 : vector<8x32xf32>
    %15 = math.exp %13 : vector<8x32xf32>
    %cst_6 = arith.constant dense<0.000000e+00> : vector<8xf32>
    %16 = vector.multi_reduction <add>, %14, %cst_6 [1] : vector<8x32xf32> to vector<8xf32>
    %17 = vector.shape_cast %16 : vector<8xf32> to vector<8x1xf32>
    %cst_7 = arith.constant dense<0.000000e+00> : vector<8xf32>
    %18 = vector.multi_reduction <add>, %15, %cst_7 [1] : vector<8x32xf32> to vector<8xf32>
    %19 = vector.shape_cast %18 : vector<8xf32> to vector<8x1xf32>
    %20 = arith.subf %13, %9 : vector<8x32xf32>
    %21 = arith.mulf %15, %20 : vector<8x32xf32>
    %cst_8 = arith.constant dense<0.000000e+00> : vector<8xf32>
    %22 = vector.multi_reduction <add>, %21, %cst_8 [1] : vector<8x32xf32> to vector<8xf32>
    %23 = vector.shape_cast %22 : vector<8xf32> to vector<8x1xf32>
    %24 = arith.divf %23, %19 : vector<8x1xf32>
    %25 = math.log %19 : vector<8x1xf32>
    %26 = math.log %17 : vector<8x1xf32>
    %27 = arith.subf %25, %26 : vector<8x1xf32>
    %28 = arith.subf %24, %27 : vector<8x1xf32>
    %cst_9 = arith.constant dense<0.000000e+00> : vector<1xf32>
    %29 = vector.multi_reduction <add>, %28, %cst_9 [0] : vector<8x1xf32> to vector<1xf32>
    %30 = vector.shape_cast %29 : vector<1xf32> to vector<1x1xf32>
    %c0_10 = arith.constant 0 : index
    %c0_11 = arith.constant 0 : index
    %31 = vector.load %arg3[%c0_10, %c0_11] : memref<1x1xf32, #tpu.memory_space<vmem>>, vector<1x1xf32>
    tpu.vector_store %arg3[%c0_10, %c0_11], %30 {strides = array<i32>} : memref<1x1xf32, #tpu.memory_space<vmem>>, vector<1x1xf32>,
    return
  }
  func.func @transform_0(%arg0: i32) -> (i32, i32) {
    %c0_i32 = arith.constant 0 : i32
    %c0_i32_0 = arith.constant 0 : i32
    return %arg0, %c0_i32 : i32, i32
  }
  func.func @transform_1(%arg0: i32) -> (i32, i32) {
    %c0_i32 = arith.constant 0 : i32
    %c0_i32_0 = arith.constant 0 : i32
    return %arg0, %c0_i32 : i32, i32
  }
  func.func @transform_2(%arg0: i32) -> (i32, i32) {
    %c0_i32 = arith.constant 0 : i32
    %c0_i32_0 = arith.constant 0 : i32
    return %arg0, %c0_i32 : i32, i32
  }
}

</mosaic_0001>

<llo_original>
// kernel: tpu_custom_call.1
$region0: #{tpu_custom_call.1}
  #allocation0 [shape = 'u32[]', space=smem, size = 0x4, offset = 0x4, fixed_abs, tag = 'smem constant byte address 0x4 - core index']
  #allocation1 [shape = 'u32[144,128]{1,0:T(1,128)}', space=vmem, size = 0x12000, scoped, tag = 'internal scratch']
  %s0 = inlined_call_operand.hbm [shape: f32[8,32], index: 0, kind: input, shape index: {}]
  %s1 = inlined_call_operand.hbm [shape: f32[8,32], index: 1, kind: input, shape index: {}]
  %s2 = inlined_call_operand.hbm [shape: f32[1,1], index: 2, kind: output, shape index: {}]
  %s3 = sld [smem:[#allocation0]]
  $region26: #{tpu_custom_call.1} parent=0
    _
  %s5 = ssub.s32 1, %s3
  %s6 = scalar_select 0, %s5, %s3
  $region1: #{tpu_custom_call.1} parent=0
    #allocation2 [shape = 'u8[4096]{0}', space=vmem, size = 0x1000, scoped, tag = 'input window, operand 0, single buffered']
    #allocation3 [shape = 's32[1]{0}', space=sflag, size = 0x4, scoped, tag = 'scoped memory for tpu_custom_call.1']
    #allocation4 [shape = 's32[1]{0}', space=sflag, size = 0x4, scoped, tag = 'scoped memory for tpu_custom_call.1']
    #allocation5 [shape = 'u8[4096]{0}', space=vmem, size = 0x1000, scoped, tag = 'input window, operand 1, single buffered']
    #allocation6 [shape = 's32[1]{0}', space=sflag, size = 0x4, scoped, tag = 'scoped memory for tpu_custom_call.1']
    #allocation7 [shape = 'u8[512]{0}', space=vmem, size = 0x400, scoped, tag = 'output window, operand 0, single buffered']
    %7 = vsyncpa [#allocation3], 0
    %8 = vsyncpa [#allocation6], 0
    %9 = vsyncpa [#allocation4], 0
    // Predicated region
    $region2: #{tpu_custom_call.1} parent=1 // pred_check
      _
    $region3: #{tpu_custom_call.1} parent=1 // pred_check_branch
      %11 = sbr.rel (0) target = $region5
    $region4: #{tpu_custom_call.1} parent=1 // pred_region
      %s13 = ssub.s32 128, 128
      %14 = vsyncadd [#allocation3], %s13
      %s16 = sshll.u32 [#allocation2], 4
      %s17 = int_to_ptr.vmem [resolvable:$true] %s16
      %19 = dma.hbm_to_vmem [thread:$0]  %s0, 128, %s17, [#allocation3]
    $region5: #{tpu_custom_call.1} parent=1 // pred_fallthru
      _
    // Predicated region
    $region6: #{tpu_custom_call.1} parent=1 // pred_check
      _
    $region7: #{tpu_custom_call.1} parent=1 // pred_check_branch
      %21 = sbr.rel (0) target = $region9
    $region8: #{tpu_custom_call.1} parent=1 // pred_region
      %s23 = ssub.s32 128, 128
      %24 = vsyncadd [#allocation6], %s23
      %s26 = sshll.u32 [#allocation5], 4
      %s27 = int_to_ptr.vmem [resolvable:$true] %s26
      %29 = dma.hbm_to_vmem [thread:$0]  %s1, 128, %s27, [#allocation6]
    $region9: #{tpu_custom_call.1} parent=1 // pred_fallthru
      _
    // Predicated region
    $region10: #{tpu_custom_call.1} parent=1 // pred_check
      _
    $region11: #{tpu_custom_call.1} parent=1 // pred_check_branch
      %31 = sbr.rel (0) target = $region13
    $region12: #{tpu_custom_call.1} parent=1 // pred_region
      %32 = dma.done [#allocation3], 128
    $region13: #{tpu_custom_call.1} parent=1 // pred_fallthru
      _
    // Predicated region
    $region14: #{tpu_custom_call.1} parent=1 // pred_check
      _
    $region15: #{tpu_custom_call.1} parent=1 // pred_check_branch
      %34 = sbr.rel (0) target = $region17
    $region16: #{tpu_custom_call.1} parent=1 // pred_region
      %35 = dma.done [#allocation6], 128
    $region17: #{tpu_custom_call.1} parent=1 // pred_fallthru
      _
    %v36 = vld [vmem:[#allocation2] sm:$0xff]
    %v37 = vmul.f32 %v36, 0.25
    %v38 = vld [vmem:[#allocation5] sm:$0xff]
    %v39 = vmul.f32 %v38, 0.25
    %vm40 = vcmask 261120
    %v41 = vsel %vm40, %v37, -inf
    %42 = vmax.xlane.f32.xlu0 %v41
    %v43 = vpop.xlane.xlu0 %42
    %v44 = vsub.f32 %v37, %v43
    %v45 = vsel %vm40, %v39, -inf
    %46 = vmax.xlane.f32.xlu0 %v45
    %v47 = vpop.xlane.xlu0 %46
    %v48 = vsub.f32 %v39, %v47
    %v49 = vmul.f32 %v44, 1.442695
    %v50 = vpow.pop %v49
    %v51 = vmul.f32 %v48, 1.442695
    %v52 = vpow.pop %v51
    %v53 = vsel %vm40, %v50, 0.0
    %54 = vadd.xlane.f32.xlu0 %v53
    %v55 = vpop.xlane.xlu0 %54
    %v56 = vsel %vm40, %v52, 0.0
    %57 = vadd.xlane.f32.xlu0 %v56
    %v58 = vpop.xlane.xlu0 %57
    %v59 = vsub.f32 %v48, %v44
    %v60 = vmul.f32 %v52, %v59
    %v61 = vsel %vm40, %v60, 0.0
    %62 = vadd.xlane.f32.xlu0 %v61
    %v63 = vpop.xlane.xlu0 %62
    %v64 = vrcp.pop %v58
    %v65 = vmul.f32 %v63, %v64
    %v66 = vlog2.pop %v58
    %v67 = vmul.f32 %v66, 0.6931472
    %v68 = vlog2.pop %v55
    %v69 = vmul.f32 %v68, 0.6931472
    %v70 = vsub.f32 %v67, %v69
    %v71 = vsub.f32 %v65, %v70
    %v72 = vrot.slane %v71, 4
    %v73 = vadd.f32 %v71, %v72
    %v74 = vrot.slane %v73, 2
    %v75 = vadd.f32 %v73, %v74
    %v76 = vrot.slane %v75, 1
    %v77 = vadd.f32 %v75, %v76
    %vm78 = vcmask 0
    %79 = vst.msk [vmem:[#allocation7] sm:$0x1] %vm78, %v77
    // Predicated region
    $region18: #{tpu_custom_call.1} parent=1 // pred_check
      _
    $region19: #{tpu_custom_call.1} parent=1 // pred_check_branch
      %81 = sbr.rel (0) target = $region21
    $region20: #{tpu_custom_call.1} parent=1 // pred_region
      %s83 = ssub.s32 16, 16
      %84 = vsyncadd [#allocation4], %s83
      %s86 = sshll.u32 [#allocation7], 4
      %s87 = int_to_ptr.vmem [resolvable:$true] %s86
      %89 = dma.vmem_to_hbm [thread:$0]  %s87, 16, %s2, [#allocation4]
    $region21: #{tpu_custom_call.1} parent=1 // pred_fallthru
      _
    // Predicated region
    $region22: #{tpu_custom_call.1} parent=1 // pred_check
      _
    $region23: #{tpu_custom_call.1} parent=1 // pred_check_branch
      %91 = sbr.rel (0) target = $region25
    $region24: #{tpu_custom_call.1} parent=1 // pred_region
      %92 = dma.done [#allocation4], 16
    $region25: #{tpu_custom_call.1} parent=1 // pred_fallthru
      _
    %93 = vsyncpa [#allocation3], 1
    %94 = vsyncpa [#allocation6], 1
    %95 = vsyncpa [#allocation4], 1

</llo_original>
